<compile_context>
chip_gen: v5e
topology: v5e:2x2
jax: 0.10.0
libtpu: 0.0.40
codegen_flags: <defaults>
</compile_context>

<pallas_src>
import functools

import jax
import jax.numpy as jnp
from jax import lax
from jax.experimental import pallas as pl
from jax.experimental.pallas import tpu as pltpu


def _round_up(x, m):
    return (x + m - 1) // m * m


def temporal_block_kernel(x_ref, w1_ref, b1_ref, w2_ref, b2_ref, wd_ref, bd_ref,
                          o_ref, xprev_ref, hprev_ref,
                          *, K, dilation, pad, TL, Nb):
    """Grid = (batch-block, time-tile); time innermost carries the causal halo.

    x_ref  : (Nb, Ci, TL)   bf16 input tile (Nb batch rows per grid step)
    w1_ref : (K, Co, Ci)    conv1 weight, one (Co, Ci) slab per dilated tap
    b1_ref : (Co, 1)        conv1 bias (f32)
    w2_ref : (K, Co, Co)    conv2 weight
    b2_ref : (Co, 1)        conv2 bias (f32)
    wd_ref : (Co, Ci)       1x1 downsample weight
    bd_ref : (Co, 1)        downsample bias (f32)
    o_ref  : (Nb, Co, TL)   output tile (bf16)

    scratch (persists across grid steps; reset when the time index is 0):
    xprev_ref : (Nb, Ci, pad)  last `pad` input columns of the previous tile
    hprev_ref : (Nb, Co, pad)  last `pad` conv1-activation columns (kept in f32)
    """
    t = pl.program_id(1)

    if pad > 0:
        @pl.when(t == 0)
        def _zero_causal_halo():
            # Causal left context: zeros at the start of every sequence
            # (== Conv1d(padding) followed by Chomp1d(padding)).
            xprev_ref[...] = jnp.zeros_like(xprev_ref)
            hprev_ref[...] = jnp.zeros_like(hprev_ref)

    b1 = b1_ref[...]
    b2 = b2_ref[...]
    bd = bd_ref[...]
    wd = wd_ref[...]

    def tap(prev, cur, off):
        # Columns [off, off + TL) of [prev | cur]  (prev is `pad` columns wide).
        if off >= pad:
            return cur
        width = pad - off
        return jnp.concatenate(
            [prev[:, off:].astype(cur.dtype), cur[:, :TL - width]], axis=1)

    for b in range(Nb):                          # static unroll over blocked rows
        x_tile = x_ref[b]                        # (Ci, TL) bf16
        xprev = xprev_ref[b] if pad > 0 else None

        # ---- conv1: K accumulating MXU dots over the dilated taps ----
        acc1 = jnp.dot(w1_ref[0], tap(xprev, x_tile, 0),
                       preferred_element_type=jnp.float32)
        for k in range(1, K):
            acc1 += jnp.dot(w1_ref[k], tap(xprev, x_tile, k * dilation),
                            preferred_element_type=jnp.float32)
        h1 = jnp.maximum(acc1 + b1, 0.0)         # (Co, TL) f32; dropout1 == identity

        # ---- conv2: same causal structure on h1 (halo carried across tiles) ----
        hprev = hprev_ref[b] if pad > 0 else None
        h1c = h1.astype(x_tile.dtype)            # single bf16 round, matmul operand only
        acc2 = jnp.dot(w2_ref[0], tap(hprev, h1c, 0),
                       preferred_element_type=jnp.float32)
        for k in range(1, K):
            acc2 += jnp.dot(w2_ref[k], tap(hprev, h1c, k * dilation),
                            preferred_element_type=jnp.float32)
        h2 = jnp.maximum(acc2 + b2, 0.0)         # dropout2 == identity

        # ---- residual: 1x1 downsample conv on the raw input tile ----
        res = jnp.dot(wd, x_tile, preferred_element_type=jnp.float32) + bd

        o_ref[b] = jnp.maximum(h2 + res, 0.0).astype(o_ref.dtype)

        # Carry the last `pad` columns into the next time tile of this row.
        if pad > 0:
            xprev_ref[b] = x_tile[:, TL - pad:]
            hprev_ref[b] = h1[:, TL - pad:]      # f32 carry


def temporal_block(x, w1, b1, w2, b2, wd=None, bd=None, *,
                   kernel_size, stride, dilation, padding,
                   time_tile=4096, batch_block=None,
                   compute_dtype=jnp.bfloat16, out_dtype=jnp.bfloat16):
    """TemporalBlock forward.

    x: (N, C_in, L) NCL.  w1: (C_out, C_in, K), w2: (C_out, C_out, K) in PyTorch
    Conv1d layout; biases (C_out,) or (C_out, 1).  wd/bd: 1x1 downsample weights
    (None => identity residual, requires C_in == C_out).
    """
    assert stride == 1, "residual add requires stride == 1"
    assert padding == dilation * (kernel_size - 1), \
        "chomp(padding) is causal only when padding == dilation * (kernel_size - 1)"
    N, C_in, L = x.shape
    C_out, _, K = w1.shape
    cd = compute_dtype

    if wd is None:                                   # identity residual branch
        assert C_in == C_out, "identity residual requires in_ch == out_ch"
        wd = jnp.eye(C_out, dtype=jnp.float32)
        bd = jnp.zeros((C_out,), jnp.float32)

    # --- time tiling: whole sequence as a single full-dim block when it fits the
    # cap; otherwise lane-dense (multiple-of-128) tiles with a carried halo.
    cap = max(_round_up(time_tile, 128), _round_up(padding + 1, 128))
    if L <= cap:
        TL, T = L, 1
    else:
        TL, T = cap, int(pl.cdiv(L, cap))  # ragged last tile: OOB writes are dropped
    assert TL > padding or padding == 0, "time tile must cover the causal halo"
    # TODO(synk): multi-tile halo carry for very deep layers where padding >= TL.

    # --- batch blocking: amortize per-grid-step overhead when T is small.
    if batch_block is None:
        batch_block = min(N, max(1, 8 // T)) if T < 8 else 1
    Nb = max(1, min(batch_block, N))
    NB = int(pl.cdiv(N, Nb))

    xk = x.astype(cd)                                   # no-op if already bf16
    w1p = jnp.transpose(w1, (2, 0, 1)).astype(cd)       # (K, Co, Ci)
    w2p = jnp.transpose(w2, (2, 0, 1)).astype(cd)       # (K, Co, Co)
    wdp = jnp.asarray(wd).astype(cd)                    # (Co, Ci)
    b1p = jnp.reshape(b1, (C_out, 1)).astype(jnp.float32)
    b2p = jnp.reshape(b2, (C_out, 1)).astype(jnp.float32)
    bdp = jnp.reshape(bd, (C_out, 1)).astype(jnp.float32)

    kern = functools.partial(temporal_block_kernel,
                             K=K, dilation=dilation, pad=padding, TL=TL, Nb=Nb)

    flops = 2 * N * L * C_out * (K * C_in + K * C_out + C_in)
    bytes_accessed = int(xk.size * jnp.dtype(cd).itemsize
                         + N * C_out * L * jnp.dtype(out_dtype).itemsize
                         + (w1p.size + w2p.size + wdp.size) * jnp.dtype(cd).itemsize
                         + 3 * C_out * 4)

    halo = max(padding, 1)
    out = pl.pallas_call(
        kern,
        out_shape=jax.ShapeDtypeStruct((N, C_out, L), out_dtype),
        grid_spec=pltpu.PrefetchScalarGridSpec(
            num_scalar_prefetch=0,
            grid=(NB, T),                 # time innermost: carries the causal halo
            in_specs=[
                pl.BlockSpec((Nb, C_in, TL), lambda n, t: (n, 0, t)),
                pl.BlockSpec((K, C_out, C_in), lambda n, t: (0, 0, 0)),
                pl.BlockSpec((C_out, 1), lambda n, t: (0, 0)),
                pl.BlockSpec((K, C_out, C_out), lambda n, t: (0, 0, 0)),
                pl.BlockSpec((C_out, 1), lambda n, t: (0, 0)),
                pl.BlockSpec((C_out, C_in), lambda n, t: (0, 0)),
                pl.BlockSpec((C_out, 1), lambda n, t: (0, 0)),
            ],
            out_specs=pl.BlockSpec((Nb, C_out, TL), lambda n, t: (n, 0, t)),
            scratch_shapes=[
                pltpu.VMEM((Nb, C_in, halo), cd),          # carried x halo
                pltpu.VMEM((Nb, C_out, halo), jnp.float32),  # carried h1 halo (f32)
            ],
        ),
        compiler_params=pltpu.CompilerParams(
            # batch blocks are independent -> megacore sharding on v7x; the time
            # axis MUST remain "arbitrary" (sequential) for the carried halo.
            dimension_semantics=("parallel", "arbitrary"),
            vmem_limit_bytes=32 * 1024 * 1024,
        ),
        cost_estimate=pl.CostEstimate(flops=flops, transcendentals=0,
                                      bytes_accessed=bytes_accessed),
    )(xk, w1p, b1p, w2p, b2p, wdp, bdp)
    return out


# ---------------- pure-JAX reference (for correctness check) ----------------
def ref_temporal_block(x, w1, b1, w2, b2, wd, bd, *, dilation, padding):
    def conv1d(inp, w, b):
        y = lax.conv_general_dilated(
            inp, w, window_strides=(1,), padding=[(padding, padding)],
            rhs_dilation=(dilation,), dimension_numbers=("NCH", "OIH", "NCH"))
        return y + b[None, :, :]

    h = conv1d(x, w1, b1)
    h = h[:, :, :-padding] if padding > 0 else h
    h = jnp.maximum(h, 0.0)
    h = conv1d(h, w2, b2)
    h = h[:, :, :-padding] if padding > 0 else h
    h = jnp.maximum(h, 0.0)
    res = jnp.einsum("oc,ncl->nol", wd, x) + bd[None, :, :]
    return jnp.maximum(h + res, 0.0)


if __name__ == "__main__":
    def run_case(N, C_in, C_out, L, K, dilation, time_tile, seed=0):
        padding = (K - 1) * dilation          # standard TCN causal padding
        key = jax.random.PRNGKey(seed)
        kx, k1, kb1, k2, kb2, kd, kbd = jax.random.split(key, 7)

        x  = jax.random.normal(kx, (N, C_in, L), jnp.float32)
        w1 = 0.3 * jax.random.normal(k1,  (C_out, C_in,  K), jnp.float32)
        b1 = 0.1 * jax.random.normal(kb1, (C_out, 1),        jnp.float32)
        w2 = 0.3 * jax.random.normal(k2,  (C_out, C_out, K), jnp.float32)
        b2 = 0.1 * jax.random.normal(kb2, (C_out, 1),        jnp.float32)
        wd = 0.3 * jax.random.normal(kd,  (C_out, C_in),     jnp.float32)
        bd = 0.1 * jax.random.normal(kbd, (C_out, 1),        jnp.float32)

        # bf16 activations/weights into the kernel (f32 accumulation inside).
        xb, w1b, w2b, wdb = (a.astype(jnp.bfloat16) for a in (x, w1, w2, wd))

        out = temporal_block(xb, w1b, b1, w2b, b2, wdb, bd,
                             kernel_size=K, stride=1,
                             dilation=dilation, padding=padding,
                             time_tile=time_tile)
        out = jax.block_until_ready(out)
        assert out.shape == (N, C_out, L)

        # f32 reference from the same bf16-rounded inputs; remaining deltas are
        # the single in-kernel bf16 round of h1 and the bf16 output cast.
        ref = ref_temporal_block(xb.astype(jnp.float32),
                                 w1b.astype(jnp.float32), b1,
                                 w2b.astype(jnp.float32), b2,
                                 wdb.astype(jnp.float32), bd,
                                 dilation=dilation, padding=padding)
        out32 = out.astype(jnp.float32)
        max_err = float(jnp.max(jnp.abs(out32 - ref)))
        assert jnp.allclose(out32, ref, atol=5e-2, rtol=5e-2), \
            f"mismatch vs JAX reference (max abs err {max_err})"

    # Small shapes consistent with the module (single full-dim time block,
    # batch-blocked grid step).
    run_case(N=2, C_in=4, C_out=8, L=16, K=3, dilation=2, time_tile=4096)
    # Exercises the carried causal halo across multiple time tiles + batch block.
    run_case(N=2, C_in=4, C_out=8, L=256, K=3, dilation=4, time_tile=128, seed=1)

    print("KERNEL_OK")
</pallas_src>

<mosaic_0001>
module attributes {stable_mosaic.version = 11 : i64} {
  func.func @temporal_block_kernel(%arg0: i32, %arg1: i32, %arg2: memref<2x4x16xbf16, #tpu.memory_space<vmem>>, %arg3: memref<3x8x4xbf16, #tpu.memory_space<vmem>>, %arg4: memref<8x1xf32, #tpu.memory_space<vmem>>, %arg5: memref<3x8x8xbf16, #tpu.memory_space<vmem>>, %arg6: memref<8x1xf32, #tpu.memory_space<vmem>>, %arg7: memref<8x4xbf16, #tpu.memory_space<vmem>>, %arg8: memref<8x1xf32, #tpu.memory_space<vmem>>, %arg9: memref<2x8x16xbf16, #tpu.memory_space<vmem>>, %arg10: memref<2x4x4xbf16, #tpu.memory_space<vmem>>, %arg11: memref<2x8x4xf32, #tpu.memory_space<vmem>>) attributes {dimension_semantics = [#tpu.dimension_semantics<parallel>, #tpu.dimension_semantics<arbitrary>], iteration_bounds = array<i64: 1, 1>, scalar_prefetch = 0 : i64, scratch_operands = 2 : i64, tpu.core_type = #tpu.core_type<tc>, window_params = [{transform_indices = @transform_0, window_bounds = array<i64: 2, 4, 16>}, {pipeline_mode = #tpu.pipeline_mode<synchronous>, transform_indices = @transform_1, window_bounds = array<i64: 3, 8, 4>}, {pipeline_mode = #tpu.pipeline_mode<synchronous>, transform_indices = @transform_2, window_bounds = array<i64: 8, 1>}, {pipeline_mode = #tpu.pipeline_mode<synchronous>, transform_indices = @transform_3, window_bounds = array<i64: 3, 8, 8>}, {pipeline_mode = #tpu.pipeline_mode<synchronous>, transform_indices = @transform_4, window_bounds = array<i64: 8, 1>}, {pipeline_mode = #tpu.pipeline_mode<synchronous>, transform_indices = @transform_5, window_bounds = array<i64: 8, 4>}, {pipeline_mode = #tpu.pipeline_mode<synchronous>, transform_indices = @transform_6, window_bounds = array<i64: 8, 1>}, {transform_indices = @transform_7, window_bounds = array<i64: 2, 8, 16>}]} {
    %c0_i32 = arith.constant 0 : i32
    %0 = arith.cmpi eq, %arg1, %c0_i32 : i32
    %1 = arith.extui %0 : i1 to i32
    %c0_i32_0 = arith.constant 0 : i32
    %2 = arith.cmpi ne, %1, %c0_i32_0 : i32
    scf.if %2 {
      %cst_97 = arith.constant 0.000000e+00 : bf16
      %141 = vector.broadcast %cst_97 : bf16 to vector<2x4x4xbf16>
      %c0_98 = arith.constant 0 : index
      %c0_99 = arith.constant 0 : index
      %c0_100 = arith.constant 0 : index
      %142 = vector.load %arg10[%c0_98, %c0_99, %c0_100] : memref<2x4x4xbf16, #tpu.memory_space<vmem>>, vector<2x4x4xbf16>
      tpu.vector_store %arg10[%c0_98, %c0_99, %c0_100], %141 {strides = array<i32>} : memref<2x4x4xbf16, #tpu.memory_space<vmem>>, vector<2x4x4xbf16>,
      %cst_101 = arith.constant 0.000000e+00 : f32
      %143 = vector.broadcast %cst_101 : f32 to vector<2x8x4xf32>
      %c0_102 = arith.constant 0 : index
      %c0_103 = arith.constant 0 : index
      %c0_104 = arith.constant 0 : index
      %144 = vector.load %arg11[%c0_102, %c0_103, %c0_104] : memref<2x8x4xf32, #tpu.memory_space<vmem>>, vector<2x8x4xf32>
      tpu.vector_store %arg11[%c0_102, %c0_103, %c0_104], %143 {strides = array<i32>} : memref<2x8x4xf32, #tpu.memory_space<vmem>>, vector<2x8x4xf32>,
    } else {
    }
    %c0 = arith.constant 0 : index
    %c0_1 = arith.constant 0 : index
    %3 = vector.load %arg4[%c0, %c0_1] : memref<8x1xf32, #tpu.memory_space<vmem>>, vector<8x1xf32>
    %c0_2 = arith.constant 0 : index
    %c0_3 = arith.constant 0 : index
    %4 = vector.load %arg6[%c0_2, %c0_3] : memref<8x1xf32, #tpu.memory_space<vmem>>, vector<8x1xf32>
    %c0_4 = arith.constant 0 : index
    %c0_5 = arith.constant 0 : index
    %5 = vector.load %arg8[%c0_4, %c0_5] : memref<8x1xf32, #tpu.memory_space<vmem>>, vector<8x1xf32>
    %c0_6 = arith.constant 0 : index
    %c0_7 = arith.constant 0 : index
    %6 = vector.load %arg7[%c0_6, %c0_7] : memref<8x4xbf16, #tpu.memory_space<vmem>>, vector<8x4xbf16>
    %c0_8 = arith.constant 0 : index
    %c0_9 = arith.constant 0 : index
    %c0_10 = arith.constant 0 : index
    %7 = vector.load %arg2[%c0_8, %c0_9, %c0_10] : memref<2x4x16xbf16, #tpu.memory_space<vmem>>, vector<1x4x16xbf16>
    %8 = vector.shape_cast %7 : vector<1x4x16xbf16> to vector<4x16xbf16>
    %c0_11 = arith.constant 0 : index
    %c0_12 = arith.constant 0 : index
    %c0_13 = arith.constant 0 : index
    %9 = vector.load %arg10[%c0_11, %c0_12, %c0_13] : memref<2x4x4xbf16, #tpu.memory_space<vmem>>, vector<1x4x4xbf16>
    %10 = vector.shape_cast %9 : vector<1x4x4xbf16> to vector<4x4xbf16>
    %c0_14 = arith.constant 0 : index
    %c0_15 = arith.constant 0 : index
    %c0_16 = arith.constant 0 : index
    %11 = vector.load %arg3[%c0_14, %c0_15, %c0_16] : memref<3x8x4xbf16, #tpu.memory_space<vmem>>, vector<1x8x4xbf16>
    %12 = vector.shape_cast %11 : vector<1x8x4xbf16> to vector<8x4xbf16>
    %13 = vector.extract_strided_slice %8 {offsets = [0, 0], sizes = [4, 12], strides = [1, 1]} : vector<4x16xbf16> to vector<4x12xbf16>
    %14 = tpu.concatenate %10, %13 in 1 : vector<4x4xbf16>, vector<4x12xbf16> -> vector<4x16xbf16>
    %cst = arith.constant dense<0.000000e+00> : vector<8x16xf32>
    %15 = tpu.matmul %12, %14, %cst {dimension_numbers = #tpu.dot_dimension_numbers<[1], [0], [0], [1], [0, 0, 1, 1], [], []>} : vector<8x4xbf16>, vector<4x16xbf16>, vector<8x16xf32> -> vector<8x16xf32>
    %c1 = arith.constant 1 : index
    %c0_17 = arith.constant 0 : index
    %c0_18 = arith.constant 0 : index
    %16 = vector.load %arg3[%c1, %c0_17, %c0_18] : memref<3x8x4xbf16, #tpu.memory_space<vmem>>, vector<1x8x4xbf16>
    %17 = vector.shape_cast %16 : vector<1x8x4xbf16> to vector<8x4xbf16>
    %18 = vector.extract_strided_slice %10 {offsets = [0, 2], sizes = [4, 2], strides = [1, 1]} : vector<4x4xbf16> to vector<4x2xbf16>
    %19 = vector.extract_strided_slice %8 {offsets = [0, 0], sizes = [4, 14], strides = [1, 1]} : vector<4x16xbf16> to vector<4x14xbf16>
    %20 = tpu.concatenate %18, %19 in 1 : vector<4x2xbf16>, vector<4x14xbf16> -> vector<4x16xbf16>
    %cst_19 = arith.constant dense<0.000000e+00> : vector<8x16xf32>
    %21 = tpu.matmul %17, %20, %cst_19 {dimension_numbers = #tpu.dot_dimension_numbers<[1], [0], [0], [1], [0, 0, 1, 1], [], []>} : vector<8x4xbf16>, vector<4x16xbf16>, vector<8x16xf32> -> vector<8x16xf32>
    %22 = arith.addf %15, %21 : vector<8x16xf32>
    %c2 = arith.constant 2 : index
    %c0_20 = arith.constant 0 : index
    %c0_21 = arith.constant 0 : index
    %23 = vector.load %arg3[%c2, %c0_20, %c0_21] : memref<3x8x4xbf16, #tpu.memory_space<vmem>>, vector<1x8x4xbf16>
    %24 = vector.shape_cast %23 : vector<1x8x4xbf16> to vector<8x4xbf16>
    %cst_22 = arith.constant dense<0.000000e+00> : vector<8x16xf32>
    %25 = tpu.matmul %24, %8, %cst_22 {dimension_numbers = #tpu.dot_dimension_numbers<[1], [0], [0], [1], [0, 0, 1, 1], [], []>} : vector<8x4xbf16>, vector<4x16xbf16>, vector<8x16xf32> -> vector<8x16xf32>
    %26 = arith.addf %22, %25 : vector<8x16xf32>
    %27 = vector.broadcast %3 : vector<8x1xf32> to vector<8x16xf32>
    %28 = arith.addf %26, %27 : vector<8x16xf32>
    %cst_23 = arith.constant 0.000000e+00 : f32
    %29 = vector.broadcast %cst_23 : f32 to vector<8x16xf32>
    %30 = arith.maximumf %28, %29 : vector<8x16xf32>
    %c0_24 = arith.constant 0 : index
    %c0_25 = arith.constant 0 : index
    %c0_26 = arith.constant 0 : index
    %31 = vector.load %arg11[%c0_24, %c0_25, %c0_26] : memref<2x8x4xf32, #tpu.memory_space<vmem>>, vector<1x8x4xf32>
    %32 = vector.shape_cast %31 : vector<1x8x4xf32> to vector<8x4xf32>
    %33 = arith.truncf %30 : vector<8x16xf32> to vector<8x16xbf16>
    %c0_27 = arith.constant 0 : index
    %c0_28 = arith.constant 0 : index
    %c0_29 = arith.constant 0 : index
    %34 = vector.load %arg5[%c0_27, %c0_28, %c0_29] : memref<3x8x8xbf16, #tpu.memory_space<vmem>>, vector<1x8x8xbf16>
    %35 = vector.shape_cast %34 : vector<1x8x8xbf16> to vector<8x8xbf16>
    %36 = arith.truncf %32 : vector<8x4xf32> to vector<8x4xbf16>
    %37 = vector.extract_strided_slice %33 {offsets = [0, 0], sizes = [8, 12], strides = [1, 1]} : vector<8x16xbf16> to vector<8x12xbf16>
    %38 = tpu.concatenate %36, %37 in 1 : vector<8x4xbf16>, vector<8x12xbf16> -> vector<8x16xbf16>
    %cst_30 = arith.constant dense<0.000000e+00> : vector<8x16xf32>
    %39 = tpu.matmul %35, %38, %cst_30 {dimension_numbers = #tpu.dot_dimension_numbers<[1], [0], [0], [1], [0, 0, 1, 1], [], []>} : vector<8x8xbf16>, vector<8x16xbf16>, vector<8x16xf32> -> vector<8x16xf32>
    %c1_31 = arith.constant 1 : index
    %c0_32 = arith.constant 0 : index
    %c0_33 = arith.constant 0 : index
    %40 = vector.load %arg5[%c1_31, %c0_32, %c0_33] : memref<3x8x8xbf16, #tpu.memory_space<vmem>>, vector<1x8x8xbf16>
    %41 = vector.shape_cast %40 : vector<1x8x8xbf16> to vector<8x8xbf16>
    %42 = vector.extract_strided_slice %32 {offsets = [0, 2], sizes = [8, 2], strides = [1, 1]} : vector<8x4xf32> to vector<8x2xf32>
    %43 = arith.truncf %42 : vector<8x2xf32> to vector<8x2xbf16>
    %44 = vector.extract_strided_slice %33 {offsets = [0, 0], sizes = [8, 14], strides = [1, 1]} : vector<8x16xbf16> to vector<8x14xbf16>
    %45 = tpu.concatenate %43, %44 in 1 : vector<8x2xbf16>, vector<8x14xbf16> -> vector<8x16xbf16>
    %cst_34 = arith.constant dense<0.000000e+00> : vector<8x16xf32>
    %46 = tpu.matmul %41, %45, %cst_34 {dimension_numbers = #tpu.dot_dimension_numbers<[1], [0], [0], [1], [0, 0, 1, 1], [], []>} : vector<8x8xbf16>, vector<8x16xbf16>, vector<8x16xf32> -> vector<8x16xf32>
    %47 = arith.addf %39, %46 : vector<8x16xf32>
    %c2_35 = arith.constant 2 : index
    %c0_36 = arith.constant 0 : index
    %c0_37 = arith.constant 0 : index
    %48 = vector.load %arg5[%c2_35, %c0_36, %c0_37] : memref<3x8x8xbf16, #tpu.memory_space<vmem>>, vector<1x8x8xbf16>
    %49 = vector.shape_cast %48 : vector<1x8x8xbf16> to vector<8x8xbf16>
    %cst_38 = arith.constant dense<0.000000e+00> : vector<8x16xf32>
    %50 = tpu.matmul %49, %33, %cst_38 {dimension_numbers = #tpu.dot_dimension_numbers<[1], [0], [0], [1], [0, 0, 1, 1], [], []>} : vector<8x8xbf16>, vector<8x16xbf16>, vector<8x16xf32> -> vector<8x16xf32>
    %51 = arith.addf %47, %50 : vector<8x16xf32>
    %52 = vector.broadcast %4 : vector<8x1xf32> to vector<8x16xf32>
    %53 = arith.addf %51, %52 : vector<8x16xf32>
    %cst_39 = arith.constant 0.000000e+00 : f32
    %54 = vector.broadcast %cst_39 : f32 to vector<8x16xf32>
    %55 = arith.maximumf %53, %54 : vector<8x16xf32>
    %cst_40 = arith.constant dense<0.000000e+00> : vector<8x16xf32>
    %56 = tpu.matmul %6, %8, %cst_40 {dimension_numbers = #tpu.dot_dimension_numbers<[1], [0], [0], [1], [0, 0, 1, 1], [], []>} : vector<8x4xbf16>, vector<4x16xbf16>, vector<8x16xf32> -> vector<8x16xf32>
    %57 = vector.broadcast %5 : vector<8x1xf32> to vector<8x16xf32>
    %58 = arith.addf %56, %57 : vector<8x16xf32>
    %59 = arith.addf %55, %58 : vector<8x16xf32>
    %cst_41 = arith.constant 0.000000e+00 : f32
    %60 = vector.broadcast %cst_41 : f32 to vector<8x16xf32>
    %61 = arith.maximumf %59, %60 : vector<8x16xf32>
    %62 = arith.truncf %61 : vector<8x16xf32> to vector<8x16xbf16>
    %c0_42 = arith.constant 0 : index
    %c0_43 = arith.constant 0 : index
    %c0_44 = arith.constant 0 : index
    %63 = vector.load %arg9[%c0_42, %c0_43, %c0_44] : memref<2x8x16xbf16, #tpu.memory_space<vmem>>, vector<1x8x16xbf16>
    %64 = vector.shape_cast %63 : vector<1x8x16xbf16> to vector<8x16xbf16>
    %65 = vector.shape_cast %62 : vector<8x16xbf16> to vector<1x8x16xbf16>
    tpu.vector_store %arg9[%c0_42, %c0_43, %c0_44], %65 {strides = array<i32>} : memref<2x8x16xbf16, #tpu.memory_space<vmem>>, vector<1x8x16xbf16>,
    %66 = vector.extract_strided_slice %8 {offsets = [0, 12], sizes = [4, 4], strides = [1, 1]} : vector<4x16xbf16> to vector<4x4xbf16>
    %c0_45 = arith.constant 0 : index
    %c0_46 = arith.constant 0 : index
    %c0_47 = arith.constant 0 : index
    %67 = vector.load %arg10[%c0_45, %c0_46, %c0_47] : memref<2x4x4xbf16, #tpu.memory_space<vmem>>, vector<1x4x4xbf16>
    %68 = vector.shape_cast %67 : vector<1x4x4xbf16> to vector<4x4xbf16>
    %69 = vector.shape_cast %66 : vector<4x4xbf16> to vector<1x4x4xbf16>
    tpu.vector_store %arg10[%c0_45, %c0_46, %c0_47], %69 {strides = array<i32>} : memref<2x4x4xbf16, #tpu.memory_space<vmem>>, vector<1x4x4xbf16>,
    %70 = vector.extract_strided_slice %30 {offsets = [0, 12], sizes = [8, 4], strides = [1, 1]} : vector<8x16xf32> to vector<8x4xf32>
    %c0_48 = arith.constant 0 : index
    %c0_49 = arith.constant 0 : index
    %c0_50 = arith.constant 0 : index
    %71 = vector.load %arg11[%c0_48, %c0_49, %c0_50] : memref<2x8x4xf32, #tpu.memory_space<vmem>>, vector<1x8x4xf32>
    %72 = vector.shape_cast %71 : vector<1x8x4xf32> to vector<8x4xf32>
    %73 = vector.shape_cast %70 : vector<8x4xf32> to vector<1x8x4xf32>
    tpu.vector_store %arg11[%c0_48, %c0_49, %c0_50], %73 {strides = array<i32>} : memref<2x8x4xf32, #tpu.memory_space<vmem>>, vector<1x8x4xf32>,
    %c1_51 = arith.constant 1 : index
    %c0_52 = arith.constant 0 : index
    %c0_53 = arith.constant 0 : index
    %74 = vector.load %arg2[%c1_51, %c0_52, %c0_53] : memref<2x4x16xbf16, #tpu.memory_space<vmem>>, vector<1x4x16xbf16>
    %75 = vector.shape_cast %74 : vector<1x4x16xbf16> to vector<4x16xbf16>
    %c1_54 = arith.constant 1 : index
    %c0_55 = arith.constant 0 : index
    %c0_56 = arith.constant 0 : index
    %76 = vector.load %arg10[%c1_54, %c0_55, %c0_56] : memref<2x4x4xbf16, #tpu.memory_space<vmem>>, vector<1x4x4xbf16>
    %77 = vector.shape_cast %76 : vector<1x4x4xbf16> to vector<4x4xbf16>
    %c0_57 = arith.constant 0 : index
    %c0_58 = arith.constant 0 : index
    %c0_59 = arith.constant 0 : index
    %78 = vector.load %arg3[%c0_57, %c0_58, %c0_59] : memref<3x8x4xbf16, #tpu.memory_space<vmem>>, vector<1x8x4xbf16>
    %79 = vector.shape_cast %78 : vector<1x8x4xbf16> to vector<8x4xbf16>
    %80 = vector.extract_strided_slice %75 {offsets = [0, 0], sizes = [4, 12], strides = [1, 1]} : vector<4x16xbf16> to vector<4x12xbf16>
    %81 = tpu.concatenate %77, %80 in 1 : vector<4x4xbf16>, vector<4x12xbf16> -> vector<4x16xbf16>
    %cst_60 = arith.constant dense<0.000000e+00> : vector<8x16xf32>
    %82 = tpu.matmul %79, %81, %cst_60 {dimension_numbers = #tpu.dot_dimension_numbers<[1], [0], [0], [1], [0, 0, 1, 1], [], []>} : vector<8x4xbf16>, vector<4x16xbf16>, vector<8x16xf32> -> vector<8x16xf32>
    %c1_61 = arith.constant 1 : index
    %c0_62 = arith.constant 0 : index
    %c0_63 = arith.constant 0 : index
    %83 = vector.load %arg3[%c1_61, %c0_62, %c0_63] : memref<3x8x4xbf16, #tpu.memory_space<vmem>>, vector<1x8x4xbf16>
    %84 = vector.shape_cast %83 : vector<1x8x4xbf16> to vector<8x4xbf16>
    %85 = vector.extract_strided_slice %77 {offsets = [0, 2], sizes = [4, 2], strides = [1, 1]} : vector<4x4xbf16> to vector<4x2xbf16>
    %86 = vector.extract_strided_slice %75 {offsets = [0, 0], sizes = [4, 14], strides = [1, 1]} : vector<4x16xbf16> to vector<4x14xbf16>
    %87 = tpu.concatenate %85, %86 in 1 : vector<4x2xbf16>, vector<4x14xbf16> -> vector<4x16xbf16>
    %cst_64 = arith.constant dense<0.000000e+00> : vector<8x16xf32>
    %88 = tpu.matmul %84, %87, %cst_64 {dimension_numbers = #tpu.dot_dimension_numbers<[1], [0], [0], [1], [0, 0, 1, 1], [], []>} : vector<8x4xbf16>, vector<4x16xbf16>, vector<8x16xf32> -> vector<8x16xf32>
    %89 = arith.addf %82, %88 : vector<8x16xf32>
    %c2_65 = arith.constant 2 : index
    %c0_66 = arith.constant 0 : index
    %c0_67 = arith.constant 0 : index
    %90 = vector.load %arg3[%c2_65, %c0_66, %c0_67] : memref<3x8x4xbf16, #tpu.memory_space<vmem>>, vector<1x8x4xbf16>
    %91 = vector.shape_cast %90 : vector<1x8x4xbf16> to vector<8x4xbf16>
    %cst_68 = arith.constant dense<0.000000e+00> : vector<8x16xf32>
    %92 = tpu.matmul %91, %75, %cst_68 {dimension_numbers = #tpu.dot_dimension_numbers<[1], [0], [0], [1], [0, 0, 1, 1], [], []>} : vector<8x4xbf16>, vector<4x16xbf16>, vector<8x16xf32> -> vector<8x16xf32>
    %93 = arith.addf %89, %92 : vector<8x16xf32>
    %94 = vector.broadcast %3 : vector<8x1xf32> to vector<8x16xf32>
    %95 = arith.addf %93, %94 : vector<8x16xf32>
    %cst_69 = arith.constant 0.000000e+00 : f32
    %96 = vector.broadcast %cst_69 : f32 to vector<8x16xf32>
    %97 = arith.maximumf %95, %96 : vector<8x16xf32>
    %c1_70 = arith.constant 1 : index
    %c0_71 = arith.constant 0 : index
    %c0_72 = arith.constant 0 : index
    %98 = vector.load %arg11[%c1_70, %c0_71, %c0_72] : memref<2x8x4xf32, #tpu.memory_space<vmem>>, vector<1x8x4xf32>
    %99 = vector.shape_cast %98 : vector<1x8x4xf32> to vector<8x4xf32>
    %100 = arith.truncf %97 : vector<8x16xf32> to vector<8x16xbf16>
    %c0_73 = arith.constant 0 : index
    %c0_74 = arith.constant 0 : index
    %c0_75 = arith.constant 0 : index
    %101 = vector.load %arg5[%c0_73, %c0_74, %c0_75] : memref<3x8x8xbf16, #tpu.memory_space<vmem>>, vector<1x8x8xbf16>
    %102 = vector.shape_cast %101 : vector<1x8x8xbf16> to vector<8x8xbf16>
    %103 = arith.truncf %99 : vector<8x4xf32> to vector<8x4xbf16>
    %104 = vector.extract_strided_slice %100 {offsets = [0, 0], sizes = [8, 12], strides = [1, 1]} : vector<8x16xbf16> to vector<8x12xbf16>
    %105 = tpu.concatenate %103, %104 in 1 : vector<8x4xbf16>, vector<8x12xbf16> -> vector<8x16xbf16>
    %cst_76 = arith.constant dense<0.000000e+00> : vector<8x16xf32>
    %106 = tpu.matmul %102, %105, %cst_76 {dimension_numbers = #tpu.dot_dimension_numbers<[1], [0], [0], [1], [0, 0, 1, 1], [], []>} : vector<8x8xbf16>, vector<8x16xbf16>, vector<8x16xf32> -> vector<8x16xf32>
    %c1_77 = arith.constant 1 : index
    %c0_78 = arith.constant 0 : index
    %c0_79 = arith.constant 0 : index
    %107 = vector.load %arg5[%c1_77, %c0_78, %c0_79] : memref<3x8x8xbf16, #tpu.memory_space<vmem>>, vector<1x8x8xbf16>
    %108 = vector.shape_cast %107 : vector<1x8x8xbf16> to vector<8x8xbf16>
    %109 = vector.extract_strided_slice %99 {offsets = [0, 2], sizes = [8, 2], strides = [1, 1]} : vector<8x4xf32> to vector<8x2xf32>
    %110 = arith.truncf %109 : vector<8x2xf32> to vector<8x2xbf16>
    %111 = vector.extract_strided_slice %100 {offsets = [0, 0], sizes = [8, 14], strides = [1, 1]} : vector<8x16xbf16> to vector<8x14xbf16>
    %112 = tpu.concatenate %110, %111 in 1 : vector<8x2xbf16>, vector<8x14xbf16> -> vector<8x16xbf16>
    %cst_80 = arith.constant dense<0.000000e+00> : vector<8x16xf32>
    %113 = tpu.matmul %108, %112, %cst_80 {dimension_numbers = #tpu.dot_dimension_numbers<[1], [0], [0], [1], [0, 0, 1, 1], [], []>} : vector<8x8xbf16>, vector<8x16xbf16>, vector<8x16xf32> -> vector<8x16xf32>
    %114 = arith.addf %106, %113 : vector<8x16xf32>
    %c2_81 = arith.constant 2 : index
    %c0_82 = arith.constant 0 : index
    %c0_83 = arith.constant 0 : index
    %115 = vector.load %arg5[%c2_81, %c0_82, %c0_83] : memref<3x8x8xbf16, #tpu.memory_space<vmem>>, vector<1x8x8xbf16>
    %116 = vector.shape_cast %115 : vector<1x8x8xbf16> to vector<8x8xbf16>
    %cst_84 = arith.constant dense<0.000000e+00> : vector<8x16xf32>
    %117 = tpu.matmul %116, %100, %cst_84 {dimension_numbers = #tpu.dot_dimension_numbers<[1], [0], [0], [1], [0, 0, 1, 1], [], []>} : vector<8x8xbf16>, vector<8x16xbf16>, vector<8x16xf32> -> vector<8x16xf32>
    %118 = arith.addf %114, %117 : vector<8x16xf32>
    %119 = vector.broadcast %4 : vector<8x1xf32> to vector<8x16xf32>
    %120 = arith.addf %118, %119 : vector<8x16xf32>
    %cst_85 = arith.constant 0.000000e+00 : f32
    %121 = vector.broadcast %cst_85 : f32 to vector<8x16xf32>
    %122 = arith.maximumf %120, %121 : vector<8x16xf32>
    %cst_86 = arith.constant dense<0.000000e+00> : vector<8x16xf32>
    %123 = tpu.matmul %6, %75, %cst_86 {dimension_numbers = #tpu.dot_dimension_numbers<[1], [0], [0], [1], [0, 0, 1, 1], [], []>} : vector<8x4xbf16>, vector<4x16xbf16>, vector<8x16xf32> -> vector<8x16xf32>
    %124 = vector.broadcast %5 : vector<8x1xf32> to vector<8x16xf32>
    %125 = arith.addf %123, %124 : vector<8x16xf32>
    %126 = arith.addf %122, %125 : vector<8x16xf32>
    %cst_87 = arith.constant 0.000000e+00 : f32
    %127 = vector.broadcast %cst_87 : f32 to vector<8x16xf32>
    %128 = arith.maximumf %126, %127 : vector<8x16xf32>
    %129 = arith.truncf %128 : vector<8x16xf32> to vector<8x16xbf16>
    %c1_88 = arith.constant 1 : index
    %c0_89 = arith.constant 0 : index
    %c0_90 = arith.constant 0 : index
    %130 = vector.load %arg9[%c1_88, %c0_89, %c0_90] : memref<2x8x16xbf16, #tpu.memory_space<vmem>>, vector<1x8x16xbf16>
    %131 = vector.shape_cast %130 : vector<1x8x16xbf16> to vector<8x16xbf16>
    %132 = vector.shape_cast %129 : vector<8x16xbf16> to vector<1x8x16xbf16>
    tpu.vector_store %arg9[%c1_88, %c0_89, %c0_90], %132 {strides = array<i32>} : memref<2x8x16xbf16, #tpu.memory_space<vmem>>, vector<1x8x16xbf16>,
    %133 = vector.extract_strided_slice %75 {offsets = [0, 12], sizes = [4, 4], strides = [1, 1]} : vector<4x16xbf16> to vector<4x4xbf16>
    %c1_91 = arith.constant 1 : index
    %c0_92 = arith.constant 0 : index
    %c0_93 = arith.constant 0 : index
    %134 = vector.load %arg10[%c1_91, %c0_92, %c0_93] : memref<2x4x4xbf16, #tpu.memory_space<vmem>>, vector<1x4x4xbf16>
    %135 = vector.shape_cast %134 : vector<1x4x4xbf16> to vector<4x4xbf16>
    %136 = vector.shape_cast %133 : vector<4x4xbf16> to vector<1x4x4xbf16>
    tpu.vector_store %arg10[%c1_91, %c0_92, %c0_93], %136 {strides = array<i32>} : memref<2x4x4xbf16, #tpu.memory_space<vmem>>, vector<1x4x4xbf16>,
    %137 = vector.extract_strided_slice %97 {offsets = [0, 12], sizes = [8, 4], strides = [1, 1]} : vector<8x16xf32> to vector<8x4xf32>
    %c1_94 = arith.constant 1 : index
    %c0_95 = arith.constant 0 : index
    %c0_96 = arith.constant 0 : index
    %138 = vector.load %arg11[%c1_94, %c0_95, %c0_96] : memref<2x8x4xf32, #tpu.memory_space<vmem>>, vector<1x8x4xf32>
    %139 = vector.shape_cast %138 : vector<1x8x4xf32> to vector<8x4xf32>
    %140 = vector.shape_cast %137 : vector<8x4xf32> to vector<1x8x4xf32>
    tpu.vector_store %arg11[%c1_94, %c0_95, %c0_96], %140 {strides = array<i32>} : memref<2x8x4xf32, #tpu.memory_space<vmem>>, vector<1x8x4xf32>,
    return
  }
  func.func @transform_0(%arg0: i32, %arg1: i32) -> (i32, i32, i32) {
    %c0_i32 = arith.constant 0 : i32
    %c0_i32_0 = arith.constant 0 : i32
    return %arg0, %c0_i32, %arg1 : i32, i32, i32
  }
  func.func @transform_1(%arg0: i32, %arg1: i32) -> (i32, i32, i32) {
    %c0_i32 = arith.constant 0 : i32
    %c0_i32_0 = arith.constant 0 : i32
    %c0_i32_1 = arith.constant 0 : i32
    %c0_i32_2 = arith.constant 0 : i32
    return %c0_i32, %c0_i32_0, %c0_i32_1 : i32, i32, i32
  }
  func.func @transform_2(%arg0: i32, %arg1: i32) -> (i32, i32) {
    %c0_i32 = arith.constant 0 : i32
    %c0_i32_0 = arith.constant 0 : i32
    %c0_i32_1 = arith.constant 0 : i32
    return %c0_i32, %c0_i32_0 : i32, i32
  }
  func.func @transform_3(%arg0: i32, %arg1: i32) -> (i32, i32, i32) {
    %c0_i32 = arith.constant 0 : i32
    %c0_i32_0 = arith.constant 0 : i32
    %c0_i32_1 = arith.constant 0 : i32
    %c0_i32_2 = arith.constant 0 : i32
    return %c0_i32, %c0_i32_0, %c0_i32_1 : i32, i32, i32
  }
  func.func @transform_4(%arg0: i32, %arg1: i32) -> (i32, i32) {
    %c0_i32 = arith.constant 0 : i32
    %c0_i32_0 = arith.constant 0 : i32
    %c0_i32_1 = arith.constant 0 : i32
    return %c0_i32, %c0_i32_0 : i32, i32
  }
  func.func @transform_5(%arg0: i32, %arg1: i32) -> (i32, i32) {
    %c0_i32 = arith.constant 0 : i32
    %c0_i32_0 = arith.constant 0 : i32
    %c0_i32_1 = arith.constant 0 : i32
    return %c0_i32, %c0_i32_0 : i32, i32
  }
  func.func @transform_6(%arg0: i32, %arg1: i32) -> (i32, i32) {
    %c0_i32 = arith.constant 0 : i32
    %c0_i32_0 = arith.constant 0 : i32
    %c0_i32_1 = arith.constant 0 : i32
    return %c0_i32, %c0_i32_0 : i32, i32
  }
  func.func @transform_7(%arg0: i32, %arg1: i32) -> (i32, i32, i32) {
    %c0_i32 = arith.constant 0 : i32
    %c0_i32_0 = arith.constant 0 : i32
    return %arg0, %c0_i32, %arg1 : i32, i32, i32
  }
}

</mosaic_0001>

<llo_original>
// kernel: tpu_custom_call.1
$region0: #{tpu_custom_call.1}
  #allocation0 [shape = 'u32[]', space=smem, size = 0x4, offset = 0x4, fixed_abs, tag = 'smem constant byte address 0x4 - core index']
  #allocation1 [shape = 'u32[72,128]{1,0:T(1,128)}', space=vmem, size = 0x9000, scoped, tag = 'internal scratch']
  #allocation2 [shape = 'bf16[2,4,4]{2,1,0:T(4,128)(2,1)}', space=vmem, size = 0x800, scoped, tag = 'scratch operand']
  #allocation3 [shape = 'f32[2,8,4]{2,1,0:T(8,128)}', space=vmem, size = 0x2000, scoped, tag = 'scratch operand']
  %s0 = inlined_call_operand.vmem [shape: bf16[2,4,16], index: 0, kind: input, shape index: {}]
  %s1 = inlined_call_operand.vmem [shape: bf16[3,8,4], index: 1, kind: input, shape index: {}]
  %s2 = inlined_call_operand.vmem [shape: f32[8,1], index: 2, kind: input, shape index: {}]
  %s3 = inlined_call_operand.vmem [shape: bf16[3,8,8], index: 3, kind: input, shape index: {}]
  %s4 = inlined_call_operand.vmem [shape: f32[8,1], index: 4, kind: input, shape index: {}]
  %s5 = inlined_call_operand.vmem [shape: bf16[8,4], index: 5, kind: input, shape index: {}]
  %s6 = inlined_call_operand.vmem [shape: f32[8,1], index: 6, kind: input, shape index: {}]
  %s7 = inlined_call_operand.hbm [shape: bf16[2,8,16], index: 7, kind: output, shape index: {}]
  %s8 = sld [smem:[#allocation0]]
  $region42: #{tpu_custom_call.1} parent=0
    _
  %s10 = ssub.s32 1, %s8
  %s11 = scalar_select 0, %s10, %s8
  $region1: #{tpu_custom_call.1} parent=0
    #allocation4 [shape = 'u8[4096]{0}', space=vmem, size = 0x1000, scoped, tag = 'output window, operand 0, single buffered']
    #allocation5 [shape = 's32[1]{0}', space=sflag, size = 0x4, scoped, tag = 'scoped memory for tpu_custom_call.1']
    %12 = vsyncpa [#allocation5], 0
    // Predicated region
    $region2: #{tpu_custom_call.1} parent=1 // pred_check
      _
    $region3: #{tpu_custom_call.1} parent=1 // pred_check_branch
      %14 = sbr.rel (0) target = $region5
    $region4: #{tpu_custom_call.1} parent=1 // pred_region
      _
    $region5: #{tpu_custom_call.1} parent=1 // pred_fallthru
      _
    // Predicated region
    $region6: #{tpu_custom_call.1} parent=1 // pred_check
      _
    $region7: #{tpu_custom_call.1} parent=1 // pred_check_branch
      %16 = sbr.rel (0) target = $region9
    $region8: #{tpu_custom_call.1} parent=1 // pred_region
      _
    $region9: #{tpu_custom_call.1} parent=1 // pred_fallthru
      _
    // Predicated region
    $region10: #{tpu_custom_call.1} parent=1 // pred_check
      _
    $region11: #{tpu_custom_call.1} parent=1 // pred_check_branch
      %18 = sbr.rel (0) target = $region13
    $region12: #{tpu_custom_call.1} parent=1 // pred_region
      _
    $region13: #{tpu_custom_call.1} parent=1 // pred_fallthru
      _
    // Predicated region
    $region14: #{tpu_custom_call.1} parent=1 // pred_check
      _
    $region15: #{tpu_custom_call.1} parent=1 // pred_check_branch
      %20 = sbr.rel (0) target = $region17
    $region16: #{tpu_custom_call.1} parent=1 // pred_region
      _
    $region17: #{tpu_custom_call.1} parent=1 // pred_fallthru
      _
    // Predicated region
    $region18: #{tpu_custom_call.1} parent=1 // pred_check
      _
    $region19: #{tpu_custom_call.1} parent=1 // pred_check_branch
      %22 = sbr.rel (0) target = $region21
    $region20: #{tpu_custom_call.1} parent=1 // pred_region
      _
    $region21: #{tpu_custom_call.1} parent=1 // pred_fallthru
      _
    // Predicated region
    $region22: #{tpu_custom_call.1} parent=1 // pred_check
      _
    $region23: #{tpu_custom_call.1} parent=1 // pred_check_branch
      %24 = sbr.rel (0) target = $region25
    $region24: #{tpu_custom_call.1} parent=1 // pred_region
      _
    $region25: #{tpu_custom_call.1} parent=1 // pred_fallthru
      _
    // Predicated region
    $region26: #{tpu_custom_call.1} parent=1 // pred_check
      _
    $region27: #{tpu_custom_call.1} parent=1 // pred_check_branch
      %26 = sbr.rel (0) target = $region29
    $region28: #{tpu_custom_call.1} parent=1 // pred_region
      _
    $region29: #{tpu_custom_call.1} parent=1 // pred_fallthru
      _
    %p28 = scmp.eq.s32.totalorder 0, 0
    // Predicated region
    $region30: #{tpu_custom_call.1} parent=1 // pred_check
      %p29 = pneg %p28
    $region31: #{tpu_custom_call.1} parent=1 // pred_check_branch
      %31 = sbr.rel (%p29) target = $region33
    $region32: #{tpu_custom_call.1} parent=1 // pred_region
      %vm32 = vcmask 25600
      %33 = vst.msk [vmem:[#allocation2] sm:$0x3] %vm32, 0
      %34 = vst.msk [vmem:[#allocation2 + $0x2] sm:$0x3] %vm32, 0
      %vm35 = vcmask 31744
      %36 = vst.msk [vmem:[#allocation3] sm:$0xff] %vm35, 0.0
      %37 = vst.msk [vmem:[#allocation3 + $0x8] sm:$0xff] %vm35, 0.0
    $region33: #{tpu_custom_call.1} parent=1 // pred_fallthru
      _
    %v38 = vld [vmem:[%s2] sm:$0xff]
    %v39 = vld [vmem:[%s4] sm:$0xff]
    %v40 = vld [vmem:[%s6] sm:$0xff]
    %v41 = vld [vmem:[%s5] sm:$0xf]
    %v42 = vld [vmem:[%s0] sm:$0x3]
    %v43 = vld [vmem:[#allocation2] sm:$0x3]
    %v44 = vld [vmem:[%s1] sm:$0xf]
    %46 = vst [vmem:[#allocation1] ss:$4 sm:$0xff] %v42
    %v47 = vld.sshfl [vmem:[#allocation1] sm:$0xff pattern:$0x73625140]
    %49 = vrot.lane.b32.xlu0 %v47, 4
    %v50 = vpop.permute.xlu0 %49
    %vm51 = vcmask 31744
    %v54 = vsel %vm51, %v43, %v50
    %s55 = scalar_lea.vmem %s1, 4
    %v56 = vld [vmem:[%s55] sm:$0xf]
    %57 = vst [vmem:[#allocation1] ss:$4 sm:$0xff] %v43
    %v58 = vld.sshfl [vmem:[#allocation1] sm:$0xff pattern:$0x73625140]
    %60 = vrot.lane.b32.xlu0 %v58, 126
    %v61 = vpop.permute.xlu0 %60
    %62 = vst [vmem:[#allocation1] ss:$4 sm:$0xff] %v42
    %v63 = vld.sshfl [vmem:[#allocation1] sm:$0xff pattern:$0x73625140]
    %65 = vrot.lane.b32.xlu0 %v63, 2
    %v66 = vpop.permute.xlu0 %65
    %vm67 = vcmask 15360
    %v70 = vsel %vm67, %v61, %v66
    %v72 = vsel %vm51, %v56, 0
    %vm74 = vcmask 1041408
    %v75 = vsel %vm74, %v70, 0
    %77 = vmatpush.bf16.msra.mxu0 0
    %78 = vmatpush.bf16.msra.mxu0 0
    %79 = vmatpush.bf16.msra.mxu0 0
    %80 = vmatpush.bf16.msra.mxu0 0
    %81 = vmatpush.bf16.msra.mxu0 0
    %82 = vmatpush.bf16.msra.mxu0 0
    %83 = vmatpush.bf16.msra.mxu0 0
    %84 = vmatpush.bf16.msra.mxu0 %v75
    %85 = vmatmul.bf16.gmra.mxu0 %v72
    %v86 = vpop.f32.mrf.mxu0
    %v87 = vadd.f32 0.0, %v86
    %v88 = vpop.f32.mrf.mxu0
    %89 = vdwg.mxu0
    %v91 = vsel %vm51, %v44, 0
    %v93 = vsel %vm74, %v54, 0
    %95 = vmatpush.bf16.msra.mxu0 0
    %96 = vmatpush.bf16.msra.mxu0 0
    %97 = vmatpush.bf16.msra.mxu0 0
    %98 = vmatpush.bf16.msra.mxu0 0
    %99 = vmatpush.bf16.msra.mxu0 0
    %100 = vmatpush.bf16.msra.mxu0 0
    %101 = vmatpush.bf16.msra.mxu0 0
    %102 = vmatpush.bf16.msra.mxu0 %v93
    %103 = vmatmul.bf16.gmra.mxu0 %v91
    %v104 = vpop.f32.mrf.mxu0
    %v105 = vadd.f32 %v87, %v104
    %v106 = vpop.f32.mrf.mxu0
    %107 = vdwg.mxu0
    %s108 = scalar_lea.vmem %s1, 8
    %v109 = vld [vmem:[%s108] sm:$0xf]
    %v111 = vsel %vm51, %v109, 0
    %v113 = vsel %vm74, %v42, 0
    %115 = vmatpush.bf16.msra.mxu0 0
    %116 = vmatpush.bf16.msra.mxu0 0
    %117 = vmatpush.bf16.msra.mxu0 0
    %118 = vmatpush.bf16.msra.mxu0 0
    %119 = vmatpush.bf16.msra.mxu0 0
    %120 = vmatpush.bf16.msra.mxu0 0
    %121 = vmatpush.bf16.msra.mxu0 0
    %122 = vmatpush.bf16.msra.mxu0 %v113
    %123 = vmatmul.bf16.gmra.mxu0 %v111
    %v124 = vpop.f32.mrf.mxu0
    %v125 = vadd.f32 0.0, %v124
    %v126 = vpop.f32.mrf.mxu0
    %127 = vdwg.mxu0
    %v128 = vadd.f32 %v105, %v125
    %130 = vset.pattern.permute.xlu0 0
    %131 = vperm.xlu0 %130, %v38
    %v132 = vpop.permute.xlu0 %131
    %v134 = vadd.f32 %v128, %v132
    %v135 = vmax.f32 %v134, 0.0
    %v136 = vld [vmem:[#allocation3] sm:$0xff]
    %v137 = vpack.c.bf16 %v135, %v135
    %v138 = vld [vmem:[%s3] sm:$0xf]
    %v139 = vpack.c.bf16 %v136, %v136
    %v141 = vunpack.c.l.b16 %v137
    %v142 = vpack.c.b16 %v141, %v141
    %143 = vrot.lane.b32.xlu0 %v142, 4
    %v144 = vpop.permute.xlu0 %143
    %v147 = vsel %vm51, %v139, %v144
    %s148 = scalar_lea.vmem %s3, 4
    %v149 = vld [vmem:[%s148] sm:$0xf]
    %v151 = vunpack.c.l.b16 %v139
    %v152 = vpack.c.b16 %v151, %v151
    %153 = vrot.lane.b32.xlu0 %v152, 126
    %v154 = vpop.permute.xlu0 %153
    %155 = vrot.lane.b32.xlu0 %v142, 2
    %v156 = vpop.permute.xlu0 %155
    %v159 = vsel %vm67, %v154, %v156
    %vm160 = vcmask 64512
    %v162 = vsel %vm160, %v149, 0
    %vm164 = vcmask 1043456
    %v165 = vsel %vm164, %v159, 0
    %167 = vmatpush.bf16.msra.mxu0 0
    %168 = vmatpush.bf16.msra.mxu0 0
    %169 = vmatpush.bf16.msra.mxu0 0
    %170 = vmatpush.bf16.msra.mxu0 0
    %171 = vmatpush.bf16.msra.mxu0 0
    %172 = vmatpush.bf16.msra.mxu0 0
    %173 = vmatpush.bf16.msra.mxu0 0
    %174 = vmatpush.bf16.msra.mxu0 %v165
    %175 = vmatmul.bf16.gmra.mxu0 %v162
    %v176 = vpop.f32.mrf.mxu0
    %v177 = vadd.f32 0.0, %v176
    %v178 = vpop.f32.mrf.mxu0
    %179 = vdwg.mxu0
    %v181 = vsel %vm160, %v138, 0
    %v183 = vsel %vm164, %v147, 0
    %185 = vmatpush.bf16.msra.mxu0 0
    %186 = vmatpush.bf16.msra.mxu0 0
    %187 = vmatpush.bf16.msra.mxu0 0
    %188 = vmatpush.bf16.msra.mxu0 0
    %189 = vmatpush.bf16.msra.mxu0 0
    %190 = vmatpush.bf16.msra.mxu0 0
    %191 = vmatpush.bf16.msra.mxu0 0
    %192 = vmatpush.bf16.msra.mxu0 %v183
    %193 = vmatmul.bf16.gmra.mxu0 %v181
    %v194 = vpop.f32.mrf.mxu0
    %v195 = vadd.f32 %v177, %v194
    %v196 = vpop.f32.mrf.mxu0
    %197 = vdwg.mxu0
    %s198 = scalar_lea.vmem %s3, 8
    %v199 = vld [vmem:[%s198] sm:$0xf]
    %v201 = vsel %vm160, %v199, 0
    %v204 = vsel %vm164, %v137, 0
    %206 = vmatpush.bf16.msra.mxu0 0
    %207 = vmatpush.bf16.msra.mxu0 0
    %208 = vmatpush.bf16.msra.mxu0 0
    %209 = vmatpush.bf16.msra.mxu0 0
    %210 = vmatpush.bf16.msra.mxu0 0
    %211 = vmatpush.bf16.msra.mxu0 0
    %212 = vmatpush.bf16.msra.mxu0 0
    %213 = vmatpush.bf16.msra.mxu0 %v204
    %214 = vmatmul.bf16.gmra.mxu0 %v201
    %v215 = vpop.f32.mrf.mxu0
    %v216 = vadd.f32 0.0, %v215
    %v217 = vpop.f32.mrf.mxu0
    %218 = vdwg.mxu0
    %v219 = vadd.f32 %v195, %v216
    %221 = vset.pattern.permute.xlu0 0
    %222 = vperm.xlu0 %221, %v39
    %v223 = vpop.permute.xlu0 %222
    %v225 = vadd.f32 %v219, %v223
    %v226 = vmax.f32 %v225, 0.0
    %228 = vset.pattern.permute.xlu0 0
    %229 = vperm.xlu0 %228, %v40
    %v230 = vpop.permute.xlu0 %229
    %v233 = vsel %vm51, %v41, 0
    %235 = vmatpush.bf16.msra.mxu0 0
    %236 = vmatpush.bf16.msra.mxu0 0
    %237 = vmatpush.bf16.msra.mxu0 0
    %238 = vmatpush.bf16.msra.mxu0 0
    %239 = vmatpush.bf16.msra.mxu0 0
    %240 = vmatpush.bf16.msra.mxu0 0
    %241 = vmatpush.bf16.msra.mxu0 0
    %242 = vmatpush.bf16.msra.mxu0 %v113
    %243 = vmatmul.bf16.gmra.mxu0 %v233
    %v244 = vpop.f32.mrf.mxu0
    %v245 = vadd.f32 %v230, %v244
    %v246 = vpop.f32.mrf.mxu0
    %247 = vdwg.mxu0
    %v248 = vadd.f32 %v226, %v245
    %v249 = vmax.f32 %v248, 0.0
    %v250 = vpack.c.bf16 %v249, %v249
    %vm251 = vcmask 125952
    %252 = vst.msk [vmem:[#allocation4] sm:$0xf] %vm251, %v250
    %254 = vrot.lane.b32.xlu0 %v42, 116
    %v255 = vpop.permute.xlu0 %254
    %vm257 = vcmask 25600
    %258 = vst.msk [vmem:[#allocation2] sm:$0x3] %vm257, %v255
    %260 = vrot.lane.b32.xlu0 %v135, 116
    %v261 = vpop.permute.xlu0 %260
    %263 = vst.msk [vmem:[#allocation3] sm:$0xff] %vm51, %v261
    %s264 = scalar_lea.vmem %s0, 2
    %v265 = vld [vmem:[%s264] sm:$0x3]
    %s266 = scalar_lea.vmem [#allocation2], 2
    %v267 = vld [vmem:[%s266] sm:$0x3]
    %v268 = vld [vmem:[%s1] sm:$0xf]
    %270 = vst [vmem:[#allocation1] ss:$4 sm:$0xff] %v265
    %v271 = vld.sshfl [vmem:[#allocation1] sm:$0xff pattern:$0x73625140]
    %273 = vrot.lane.b32.xlu0 %v271, 4
    %v274 = vpop.permute.xlu0 %273
    %v277 = vsel %vm51, %v267, %v274
    %v278 = vld [vmem:[%s55] sm:$0xf]
    %279 = vst [vmem:[#allocation1] ss:$4 sm:$0xff] %v267
    %v280 = vld.sshfl [vmem:[#allocation1] sm:$0xff pattern:$0x73625140]
    %282 = vrot.lane.b32.xlu0 %v280, 126
    %v283 = vpop.permute.xlu0 %282
    %284 = vst [vmem:[#allocation1] ss:$4 sm:$0xff] %v265
    %v285 = vld.sshfl [vmem:[#allocation1] sm:$0xff pattern:$0x73625140]
    %287 = vrot.lane.b32.xlu0 %v285, 2
    %v288 = vpop.permute.xlu0 %287
    %v291 = vsel %vm67, %v283, %v288
    %v293 = vsel %vm51, %v278, 0
    %v295 = vsel %vm74, %v291, 0
    %297 = vmatpush.bf16.msra.mxu0 0
    %298 = vmatpush.bf16.msra.mxu0 0
    %299 = vmatpush.bf16.msra.mxu0 0
    %300 = vmatpush.bf16.msra.mxu0 0
    %301 = vmatpush.bf16.msra.mxu0 0
    %302 = vmatpush.bf16.msra.mxu0 0
    %303 = vmatpush.bf16.msra.mxu0 0
    %304 = vmatpush.bf16.msra.mxu0 %v295
    %305 = vmatmul.bf16.gmra.mxu0 %v293
    %v306 = vpop.f32.mrf.mxu0
    %v307 = vadd.f32 0.0, %v306
    %v308 = vpop.f32.mrf.mxu0
    %309 = vdwg.mxu0
    %v311 = vsel %vm51, %v268, 0
    %v313 = vsel %vm74, %v277, 0
    %315 = vmatpush.bf16.msra.mxu0 0
    %316 = vmatpush.bf16.msra.mxu0 0
    %317 = vmatpush.bf16.msra.mxu0 0
    %318 = vmatpush.bf16.msra.mxu0 0
    %319 = vmatpush.bf16.msra.mxu0 0
    %320 = vmatpush.bf16.msra.mxu0 0
    %321 = vmatpush.bf16.msra.mxu0 0
    %322 = vmatpush.bf16.msra.mxu0 %v313
    %323 = vmatmul.bf16.gmra.mxu0 %v311
    %v324 = vpop.f32.mrf.mxu0
    %v325 = vadd.f32 %v307, %v324
    %v326 = vpop.f32.mrf.mxu0
    %327 = vdwg.mxu0
    %v328 = vld [vmem:[%s108] sm:$0xf]
    %v330 = vsel %vm51, %v328, 0
    %v332 = vsel %vm74, %v265, 0
    %334 = vmatpush.bf16.msra.mxu0 0
    %335 = vmatpush.bf16.msra.mxu0 0
    %336 = vmatpush.bf16.msra.mxu0 0
    %337 = vmatpush.bf16.msra.mxu0 0
    %338 = vmatpush.bf16.msra.mxu0 0
    %339 = vmatpush.bf16.msra.mxu0 0
    %340 = vmatpush.bf16.msra.mxu0 0
    %341 = vmatpush.bf16.msra.mxu0 %v332
    %342 = vmatmul.bf16.gmra.mxu0 %v330
    %v343 = vpop.f32.mrf.mxu0
    %v344 = vadd.f32 0.0, %v343
    %v345 = vpop.f32.mrf.mxu0
    %346 = vdwg.mxu0
    %v347 = vadd.f32 %v325, %v344
    %v348 = vadd.f32 %v347, %v132
    %v349 = vmax.f32 %v348, 0.0
    %s350 = scalar_lea.vmem [#allocation3], 8
    %v351 = vld [vmem:[%s350] sm:$0xff]
    %v352 = vpack.c.bf16 %v349, %v349
    %v353 = vld [vmem:[%s3] sm:$0xf]
    %v354 = vpack.c.bf16 %v351, %v351
    %v356 = vunpack.c.l.b16 %v352
    %v357 = vpack.c.b16 %v356, %v356
    %358 = vrot.lane.b32.xlu0 %v357, 4
    %v359 = vpop.permute.xlu0 %358
    %v362 = vsel %vm51, %v354, %v359
    %v363 = vld [vmem:[%s148] sm:$0xf]
    %v365 = vunpack.c.l.b16 %v354
    %v366 = vpack.c.b16 %v365, %v365
    %367 = vrot.lane.b32.xlu0 %v366, 126
    %v368 = vpop.permute.xlu0 %367
    %369 = vrot.lane.b32.xlu0 %v357, 2
    %v370 = vpop.permute.xlu0 %369
    %v373 = vsel %vm67, %v368, %v370
    %v375 = vsel %vm160, %v363, 0
    %v377 = vsel %vm164, %v373, 0
    %379 = vmatpush.bf16.msra.mxu0 0
    %380 = vmatpush.bf16.msra.mxu0 0
    %381 = vmatpush.bf16.msra.mxu0 0
    %382 = vmatpush.bf16.msra.mxu0 0
    %383 = vmatpush.bf16.msra.mxu0 0
    %384 = vmatpush.bf16.msra.mxu0 0
    %385 = vmatpush.bf16.msra.mxu0 0
    %386 = vmatpush.bf16.msra.mxu0 %v377
    %387 = vmatmul.bf16.gmra.mxu0 %v375
    %v388 = vpop.f32.mrf.mxu0
    %v389 = vadd.f32 0.0, %v388
    %v390 = vpop.f32.mrf.mxu0
    %391 = vdwg.mxu0
    %v393 = vsel %vm160, %v353, 0
    %v395 = vsel %vm164, %v362, 0
    %397 = vmatpush.bf16.msra.mxu0 0
    %398 = vmatpush.bf16.msra.mxu0 0
    %399 = vmatpush.bf16.msra.mxu0 0
    %400 = vmatpush.bf16.msra.mxu0 0
    %401 = vmatpush.bf16.msra.mxu0 0
    %402 = vmatpush.bf16.msra.mxu0 0
    %403 = vmatpush.bf16.msra.mxu0 0
    %404 = vmatpush.bf16.msra.mxu0 %v395
    %405 = vmatmul.bf16.gmra.mxu0 %v393
    %v406 = vpop.f32.mrf.mxu0
    %v407 = vadd.f32 %v389, %v406
    %v408 = vpop.f32.mrf.mxu0
    %409 = vdwg.mxu0
    %v410 = vld [vmem:[%s198] sm:$0xf]
    %v412 = vsel %vm160, %v410, 0
    %v415 = vsel %vm164, %v352, 0
    %417 = vmatpush.bf16.msra.mxu0 0
    %418 = vmatpush.bf16.msra.mxu0 0
    %419 = vmatpush.bf16.msra.mxu0 0
    %420 = vmatpush.bf16.msra.mxu0 0
    %421 = vmatpush.bf16.msra.mxu0 0
    %422 = vmatpush.bf16.msra.mxu0 0
    %423 = vmatpush.bf16.msra.mxu0 0
    %424 = vmatpush.bf16.msra.mxu0 %v415
    %425 = vmatmul.bf16.gmra.mxu0 %v412
    %v426 = vpop.f32.mrf.mxu0
    %v427 = vadd.f32 0.0, %v426
    %v428 = vpop.f32.mrf.mxu0
    %429 = vdwg.mxu0
    %v430 = vadd.f32 %v407, %v427
    %v431 = vadd.f32 %v430, %v223
    %v432 = vmax.f32 %v431, 0.0
    %433 = vmatpush.bf16.msra.mxu0 0
    %434 = vmatpush.bf16.msra.mxu0 0
    %435 = vmatpush.bf16.msra.mxu0 0
    %436 = vmatpush.bf16.msra.mxu0 0
    %437 = vmatpush.bf16.msra.mxu0 0
    %438 = vmatpush.bf16.msra.mxu0 0
    %439 = vmatpush.bf16.msra.mxu0 0
    %440 = vmatpush.bf16.msra.mxu0 %v332
    %441 = vmatmul.bf16.gmra.mxu0 %v233
    %v442 = vpop.f32.mrf.mxu0
    %v443 = vadd.f32 %v230, %v442
    %v444 = vpop.f32.mrf.mxu0
    %445 = vdwg.mxu0
    %v446 = vadd.f32 %v432, %v443
    %v447 = vmax.f32 %v446, 0.0
    %v448 = vpack.c.bf16 %v447, %v447
    %s449 = scalar_lea.vmem [#allocation4], 4
    %450 = vst.msk [vmem:[%s449] sm:$0xf] %vm251, %v448
    %452 = vrot.lane.b32.xlu0 %v265, 116
    %v453 = vpop.permute.xlu0 %452
    %455 = vst.msk [vmem:[%s266] sm:$0x3] %vm257, %v453
    %457 = vrot.lane.b32.xlu0 %v349, 116
    %v458 = vpop.permute.xlu0 %457
    %460 = vst.msk [vmem:[%s350] sm:$0xff] %vm51, %v458
    // Predicated region
    $region34: #{tpu_custom_call.1} parent=1 // pred_check
      _
    $region35: #{tpu_custom_call.1} parent=1 // pred_check_branch
      %462 = sbr.rel (0) target = $region37
    $region36: #{tpu_custom_call.1} parent=1 // pred_region
      %464 = vsyncadd [#allocation5], 0
      %s465 = sshll.u32 [#allocation4], 4
      %s466 = int_to_ptr.vmem [resolvable:$true] %s465
      %s467 = sshll.u32 %s7, 4
      %s468 = int_to_ptr.hbm [resolvable:$true] %s467
      %473 = dma.vmem_to_hbm [thread:$0]  %s466, 128, %s468, [#allocation5], 64, 64, 4
    $region37: #{tpu_custom_call.1} parent=1 // pred_fallthru
      _
    // Predicated region
    $region38: #{tpu_custom_call.1} parent=1 // pred_check
      _
    $region39: #{tpu_custom_call.1} parent=1 // pred_check_branch
      %475 = sbr.rel (0) target = $region41
    $region40: #{tpu_custom_call.1} parent=1 // pred_region
      %477 = dma.done [#allocation5], 128
    $region41: #{tpu_custom_call.1} parent=1 // pred_fallthru
      _
    %478 = vsyncpa [#allocation5], 1

</llo_original>
